<compile_context>
chip_gen: v7x
topology: tpu7x:2x2x1
jax: 0.10.0
libtpu: 0.0.40
codegen_flags: <defaults>
</compile_context>

<pallas_src>
import functools

import numpy as np
import jax
import jax.numpy as jnp
from jax import lax
from jax.experimental import pallas as pl
from jax.experimental.pallas import tpu as pltpu

_LANE = 128      # vreg lane width   (last dim)
_SUBLANE = 8     # vreg sublane rows (second-to-last dim)


def _round_up(n, m):
    return ((n + m - 1) // m) * m


def _echo_seq_kernel(alpha, x_ref, u0_ref, h0_ref, win_ref, wr_ref,
                     h_seq_ref, u_state_ref, h_state_ref):
    """One RNN timestep per grid iteration; u/h carried in resident output tiles."""
    t = pl.program_id(0)

    # Load the initial state into the resident state tiles on the first step.
    @pl.when(t == 0)
    def _():
        u_state_ref[...] = u0_ref[...]
        h_state_ref[...] = h0_ref[...]

    x = x_ref[0]               # (Bp, I)
    u = u_state_ref[...]       # (Bp, Hp)
    h = h_state_ref[...]       # (Bp, Hp)

    # Contract the last axis of both operands: x[B,I]·win[H,I] == x @ win.T
    # (no wrapper-side transpose copies; lowers to the same MXU op).
    contract_last = (((1,), (1,)), ((), ()))
    inp_proj = lax.dot_general(x, win_ref[...], dimension_numbers=contract_last,
                               preferred_element_type=jnp.float32)
    rec_proj = lax.dot_general(h, wr_ref[...], dimension_numbers=contract_last,
                               preferred_element_type=jnp.float32)

    u_new = u + alpha * (-u + inp_proj + rec_proj)
    h_new = jnp.tanh(u_new)

    # Carry state to the next grid iteration (tiles stay resident: constant
    # block index along the time axis) and emit the lane-dense h trajectory.
    u_state_ref[...] = u_new
    h_state_ref[...] = h_new
    h_seq_ref[0] = h_new


@functools.partial(jax.jit, static_argnums=(5,))
def _simple_echo_sequence_impl(x_seq, u, h, win, wr, alpha):
    T, B, I = x_seq.shape
    H = wr.shape[0]
    Bp = _round_up(B, _SUBLANE)
    Hp = _round_up(H, _LANE)

    f32 = jnp.float32
    xp = jnp.pad(x_seq.astype(f32), ((0, 0), (0, Bp - B), (0, 0)))
    up = jnp.pad(u.astype(f32), ((0, Bp - B), (0, Hp - H)))
    hp = jnp.pad(h.astype(f32), ((0, Bp - B), (0, Hp - H)))
    winp = jnp.pad(win.astype(f32), ((0, Hp - H), (0, 0)))
    wrp = jnp.pad(wr.astype(f32), ((0, Hp - H), (0, Hp - H)))

    h_seq, u_fin, h_fin = pl.pallas_call(
        functools.partial(_echo_seq_kernel, alpha),
        out_shape=(
            jax.ShapeDtypeStruct((T, Bp, Hp), f32),   # h trajectory (lane-dense)
            jax.ShapeDtypeStruct((Bp, Hp), f32),      # final u (carried state)
            jax.ShapeDtypeStruct((Bp, Hp), f32),      # final h (carried state)
        ),
        grid=(T,),
        in_specs=[
            pl.BlockSpec((1, Bp, I), lambda t: (t, 0, 0)),   # x_t streamed per step
            pl.BlockSpec((Bp, Hp), lambda t: (0, 0)),        # u0 (read at t==0)
            pl.BlockSpec((Bp, Hp), lambda t: (0, 0)),        # h0 (read at t==0)
            pl.BlockSpec((Hp, I), lambda t: (0, 0)),         # win resident in VMEM
            pl.BlockSpec((Hp, Hp), lambda t: (0, 0)),        # wr  resident in VMEM
        ],
        out_specs=(
            pl.BlockSpec((1, Bp, Hp), lambda t: (t, 0, 0)),  # h trajectory
            pl.BlockSpec((Bp, Hp), lambda t: (0, 0)),        # u state (accumulator)
            pl.BlockSpec((Bp, Hp), lambda t: (0, 0)),        # h state (accumulator)
        ),
        # In-place state update: padded u0 -> final u, padded h0 -> final h.
        input_output_aliases={1: 1, 2: 2},
        compiler_params=pltpu.CompilerParams(
            # Time is a serial carry -> must stay "arbitrary".
            dimension_semantics=("arbitrary",)),
    )(xp, up, hp, winp, wrp)

    return (h_seq[:, :B, :H], u_fin[:B, :H], h_fin[:B, :H])


def simple_echo_sequence(x_seq, hid, win, wr, alpha):
    """Run T fused SimpleEcho steps in one pallas_call.

    x_seq : (T, B, inp_num) f32
    hid   : (u, h), each (B, hid_num) f32
    Returns (h_trajectory (T,B,H), (u_final, h_final)).
    """
    u, h = hid
    h_seq, u_fin, h_fin = _simple_echo_sequence_impl(x_seq, u, h, win, wr,
                                                     float(alpha))
    return h_seq, (u_fin, h_fin)


def simple_echo_forward(x, hid, win, wr, alpha):
    """Single-step forward, exactly matching SimpleEcho.forward semantics."""
    _, (u_new, h_new) = simple_echo_sequence(x[None], hid, win, wr, alpha)
    return h_new, (u_new, h_new)


def init_simple_echo_weights(inp_num, hid_num, alpha, scale=1.3,
                             spars_p=0.1, spars_echo=0.1, scale_echo=1.0,
                             seed=0):
    """Deterministic replication of SimpleEcho.init_weights (init_mode='mode_a')."""
    rng = np.random.RandomState(seed)

    wr = rng.rand(hid_num, hid_num) - 0.5
    wr[rng.rand(hid_num, hid_num) > spars_p] = 0.0
    radius = np.max(np.abs(np.linalg.eigvals(wr)))
    wr = wr / (radius - 1.0 + alpha) * (scale - 1.0 + alpha)

    win = rng.uniform(low=-scale_echo, high=scale_echo, size=(hid_num, inp_num))
    win[rng.rand(hid_num, inp_num) > spars_echo] = 0.0

    return (jnp.asarray(win, dtype=jnp.float32),
            jnp.asarray(wr, dtype=jnp.float32))


if __name__ == "__main__":
    batch = 4
    inp_num = 4
    hid_num = 32
    seq_len = 8
    tau, dt = 10.0, 1.0
    alpha = dt / tau

    win, wr = init_simple_echo_weights(inp_num, hid_num, alpha)

    key = jax.random.PRNGKey(0)
    kx, ku, kh, ks = jax.random.split(key, 4)
    x = jax.random.normal(kx, (batch, inp_num), dtype=jnp.float32)
    u = jax.random.normal(ku, (batch, hid_num), dtype=jnp.float32)
    h = jnp.tanh(jax.random.normal(kh, (batch, hid_num), dtype=jnp.float32))

    # --- 1) Single-step forward: module semantics ------------------------
    h_new, (u_new, h_new2) = simple_echo_forward(x, (u, h), win, wr, alpha)
    jax.block_until_ready((h_new, u_new, h_new2))

    u_ref = u + alpha * (-u + x @ win.T + h @ wr.T)
    h_ref = jnp.tanh(u_ref)
    np.testing.assert_allclose(np.asarray(u_new), np.asarray(u_ref),
                               rtol=1e-5, atol=1e-5)
    np.testing.assert_allclose(np.asarray(h_new), np.asarray(h_ref),
                               rtol=1e-5, atol=1e-5)
    np.testing.assert_allclose(np.asarray(h_new2), np.asarray(h_ref),
                               rtol=1e-5, atol=1e-5)

    # --- 2) Fused time loop: weights resident, state carried in VMEM -----
    x_seq = jax.random.normal(ks, (seq_len, batch, inp_num), dtype=jnp.float32)
    h_traj, (u_fin, h_fin) = simple_echo_sequence(x_seq, (u, h), win, wr, alpha)
    jax.block_until_ready((h_traj, u_fin, h_fin))

    def ref_step(carry, xt):
        uu, hh = carry
        un = uu + alpha * (-uu + xt @ win.T + hh @ wr.T)
        hn = jnp.tanh(un)
        return (un, hn), hn

    (u_ref_fin, h_ref_fin), h_ref_traj = lax.scan(ref_step, (u, h), x_seq)
    np.testing.assert_allclose(np.asarray(h_traj), np.asarray(h_ref_traj),
                               rtol=1e-5, atol=1e-5)
    np.testing.assert_allclose(np.asarray(u_fin), np.asarray(u_ref_fin),
                               rtol=1e-5, atol=1e-5)
    np.testing.assert_allclose(np.asarray(h_fin), np.asarray(h_ref_fin),
                               rtol=1e-5, atol=1e-5)

    print("KERNEL_OK")
</pallas_src>

<mosaic_0001>
module attributes {stable_mosaic.version = 11 : i64} {
  func.func @_echo_seq_kernel(%arg0: i32, %arg1: memref<1x8x4xf32, #tpu.memory_space<vmem>>, %arg2: memref<8x128xf32, #tpu.memory_space<vmem>>, %arg3: memref<8x128xf32, #tpu.memory_space<vmem>>, %arg4: memref<128x4xf32, #tpu.memory_space<vmem>>, %arg5: memref<128x128xf32, #tpu.memory_space<vmem>>, %arg6: memref<1x8x128xf32, #tpu.memory_space<vmem>>, %arg7: memref<8x128xf32, #tpu.memory_space<vmem>>, %arg8: memref<8x128xf32, #tpu.memory_space<vmem>>) attributes {dimension_semantics = [#tpu.dimension_semantics<arbitrary>], iteration_bounds = array<i64: 1>, scalar_prefetch = 0 : i64, scratch_operands = 0 : i64, tpu.core_type = #tpu.core_type<tc>, window_params = [{transform_indices = @transform_0, window_bounds = array<i64: 1, 8, 4>}, {pipeline_mode = #tpu.pipeline_mode<synchronous>, transform_indices = @transform_1, window_bounds = array<i64: 8, 128>}, {pipeline_mode = #tpu.pipeline_mode<synchronous>, transform_indices = @transform_2, window_bounds = array<i64: 8, 128>}, {pipeline_mode = #tpu.pipeline_mode<synchronous>, transform_indices = @transform_3, window_bounds = array<i64: 128, 4>}, {pipeline_mode = #tpu.pipeline_mode<synchronous>, transform_indices = @transform_4, window_bounds = array<i64: 128, 128>}, {transform_indices = @transform_5, window_bounds = array<i64: 1, 8, 128>}, {pipeline_mode = #tpu.pipeline_mode<synchronous>, transform_indices = @transform_6, window_bounds = array<i64: 8, 128>}, {pipeline_mode = #tpu.pipeline_mode<synchronous>, transform_indices = @transform_7, window_bounds = array<i64: 8, 128>}]} {
    %c0_i32 = arith.constant 0 : i32
    %0 = arith.cmpi eq, %arg0, %c0_i32 : i32
    %1 = arith.extui %0 : i1 to i32
    %c0_i32_0 = arith.constant 0 : i32
    %2 = arith.cmpi ne, %1, %c0_i32_0 : i32
    scf.if %2 {
      %c0_21 = arith.constant 0 : index
      %c0_22 = arith.constant 0 : index
      %24 = vector.load %arg2[%c0_21, %c0_22] : memref<8x128xf32, #tpu.memory_space<vmem>>, vector<8x128xf32>
      %c0_23 = arith.constant 0 : index
      %c0_24 = arith.constant 0 : index
      %25 = vector.load %arg7[%c0_23, %c0_24] : memref<8x128xf32, #tpu.memory_space<vmem>>, vector<8x128xf32>
      tpu.vector_store %arg7[%c0_23, %c0_24], %24 {strides = array<i32>} : memref<8x128xf32, #tpu.memory_space<vmem>>, vector<8x128xf32>,
      %c0_25 = arith.constant 0 : index
      %c0_26 = arith.constant 0 : index
      %26 = vector.load %arg3[%c0_25, %c0_26] : memref<8x128xf32, #tpu.memory_space<vmem>>, vector<8x128xf32>
      %c0_27 = arith.constant 0 : index
      %c0_28 = arith.constant 0 : index
      %27 = vector.load %arg8[%c0_27, %c0_28] : memref<8x128xf32, #tpu.memory_space<vmem>>, vector<8x128xf32>
      tpu.vector_store %arg8[%c0_27, %c0_28], %26 {strides = array<i32>} : memref<8x128xf32, #tpu.memory_space<vmem>>, vector<8x128xf32>,
    } else {
    }
    %c0 = arith.constant 0 : index
    %c0_1 = arith.constant 0 : index
    %c0_2 = arith.constant 0 : index
    %3 = vector.load %arg1[%c0, %c0_1, %c0_2] : memref<1x8x4xf32, #tpu.memory_space<vmem>>, vector<1x8x4xf32>
    %4 = vector.shape_cast %3 : vector<1x8x4xf32> to vector<8x4xf32>
    %c0_3 = arith.constant 0 : index
    %c0_4 = arith.constant 0 : index
    %5 = vector.load %arg7[%c0_3, %c0_4] : memref<8x128xf32, #tpu.memory_space<vmem>>, vector<8x128xf32>
    %c0_5 = arith.constant 0 : index
    %c0_6 = arith.constant 0 : index
    %6 = vector.load %arg8[%c0_5, %c0_6] : memref<8x128xf32, #tpu.memory_space<vmem>>, vector<8x128xf32>
    %c0_7 = arith.constant 0 : index
    %c0_8 = arith.constant 0 : index
    %7 = vector.load %arg4[%c0_7, %c0_8] : memref<128x4xf32, #tpu.memory_space<vmem>>, vector<128x4xf32>
    %cst = arith.constant dense<0.000000e+00> : vector<8x128xf32>
    %8 = tpu.matmul %4, %7, %cst {dimension_numbers = #tpu.dot_dimension_numbers<[1], [1], [0], [0], [0, 0, 1, 0], [], []>} : vector<8x4xf32>, vector<128x4xf32>, vector<8x128xf32> -> vector<8x128xf32>
    %c0_9 = arith.constant 0 : index
    %c0_10 = arith.constant 0 : index
    %9 = vector.load %arg5[%c0_9, %c0_10] : memref<128x128xf32, #tpu.memory_space<vmem>>, vector<128x128xf32>
    %cst_11 = arith.constant dense<0.000000e+00> : vector<8x128xf32>
    %10 = tpu.matmul %6, %9, %cst_11 {dimension_numbers = #tpu.dot_dimension_numbers<[1], [1], [0], [0], [0, 0, 1, 0], [], []>} : vector<8x128xf32>, vector<128x128xf32>, vector<8x128xf32> -> vector<8x128xf32>
    %cst_12 = arith.constant 0.000000e+00 : f32
    %11 = vector.broadcast %cst_12 : f32 to vector<8x128xf32>
    %12 = arith.subf %11, %5 : vector<8x128xf32>
    %13 = arith.addf %12, %8 : vector<8x128xf32>
    %14 = arith.addf %13, %10 : vector<8x128xf32>
    %cst_13 = arith.constant 1.000000e-01 : f32
    %15 = vector.broadcast %cst_13 : f32 to vector<8x128xf32>
    %16 = arith.mulf %15, %14 : vector<8x128xf32>
    %17 = arith.addf %5, %16 : vector<8x128xf32>
    %18 = math.tanh %17 : vector<8x128xf32>
    %c0_14 = arith.constant 0 : index
    %c0_15 = arith.constant 0 : index
    %19 = vector.load %arg7[%c0_14, %c0_15] : memref<8x128xf32, #tpu.memory_space<vmem>>, vector<8x128xf32>
    tpu.vector_store %arg7[%c0_14, %c0_15], %17 {strides = array<i32>} : memref<8x128xf32, #tpu.memory_space<vmem>>, vector<8x128xf32>,
    %c0_16 = arith.constant 0 : index
    %c0_17 = arith.constant 0 : index
    %20 = vector.load %arg8[%c0_16, %c0_17] : memref<8x128xf32, #tpu.memory_space<vmem>>, vector<8x128xf32>
    tpu.vector_store %arg8[%c0_16, %c0_17], %18 {strides = array<i32>} : memref<8x128xf32, #tpu.memory_space<vmem>>, vector<8x128xf32>,
    %c0_18 = arith.constant 0 : index
    %c0_19 = arith.constant 0 : index
    %c0_20 = arith.constant 0 : index
    %21 = vector.load %arg6[%c0_18, %c0_19, %c0_20] : memref<1x8x128xf32, #tpu.memory_space<vmem>>, vector<1x8x128xf32>
    %22 = vector.shape_cast %21 : vector<1x8x128xf32> to vector<8x128xf32>
    %23 = vector.shape_cast %18 : vector<8x128xf32> to vector<1x8x128xf32>
    tpu.vector_store %arg6[%c0_18, %c0_19, %c0_20], %23 {strides = array<i32>} : memref<1x8x128xf32, #tpu.memory_space<vmem>>, vector<1x8x128xf32>,
    return
  }
  func.func @transform_0(%arg0: i32) -> (i32, i32, i32) {
    %c0_i32 = arith.constant 0 : i32
    %c0_i32_0 = arith.constant 0 : i32
    %c0_i32_1 = arith.constant 0 : i32
    return %arg0, %c0_i32, %c0_i32_0 : i32, i32, i32
  }
  func.func @transform_1(%arg0: i32) -> (i32, i32) {
    %c0_i32 = arith.constant 0 : i32
    %c0_i32_0 = arith.constant 0 : i32
    %c0_i32_1 = arith.constant 0 : i32
    return %c0_i32, %c0_i32_0 : i32, i32
  }
  func.func @transform_2(%arg0: i32) -> (i32, i32) {
    %c0_i32 = arith.constant 0 : i32
    %c0_i32_0 = arith.constant 0 : i32
    %c0_i32_1 = arith.constant 0 : i32
    return %c0_i32, %c0_i32_0 : i32, i32
  }
  func.func @transform_3(%arg0: i32) -> (i32, i32) {
    %c0_i32 = arith.constant 0 : i32
    %c0_i32_0 = arith.constant 0 : i32
    %c0_i32_1 = arith.constant 0 : i32
    return %c0_i32, %c0_i32_0 : i32, i32
  }
  func.func @transform_4(%arg0: i32) -> (i32, i32) {
    %c0_i32 = arith.constant 0 : i32
    %c0_i32_0 = arith.constant 0 : i32
    %c0_i32_1 = arith.constant 0 : i32
    return %c0_i32, %c0_i32_0 : i32, i32
  }
  func.func @transform_5(%arg0: i32) -> (i32, i32, i32) {
    %c0_i32 = arith.constant 0 : i32
    %c0_i32_0 = arith.constant 0 : i32
    %c0_i32_1 = arith.constant 0 : i32
    return %arg0, %c0_i32, %c0_i32_0 : i32, i32, i32
  }
  func.func @transform_6(%arg0: i32) -> (i32, i32) {
    %c0_i32 = arith.constant 0 : i32
    %c0_i32_0 = arith.constant 0 : i32
    %c0_i32_1 = arith.constant 0 : i32
    return %c0_i32, %c0_i32_0 : i32, i32
  }
  func.func @transform_7(%arg0: i32) -> (i32, i32) {
    %c0_i32 = arith.constant 0 : i32
    %c0_i32_0 = arith.constant 0 : i32
    %c0_i32_1 = arith.constant 0 : i32
    return %c0_i32, %c0_i32_0 : i32, i32
  }
}

</mosaic_0001>

<llo_original>
// kernel: _simple_echo_sequence_impl.1
$region0: #{_simple_echo_sequence_impl.1}
  #allocation0 [shape = 'u32[]', space=smem, size = 0x4, offset = 0x4, fixed_abs, tag = 'smem constant byte address 0x4 - core index']
  #allocation1 [shape = 'u32[144,128]{1,0:T(1,128)}', space=vmem, size = 0x12000, scoped, tag = 'internal scratch']
  %s0 = inlined_call_operand.vmem [shape: f32[1,8,4], index: 0, kind: input, shape index: {}]
  %s1 = inlined_call_operand.vmem [shape: f32[8,128], index: 1, kind: input, shape index: {}, may-alias: {1,6}]
  %s2 = inlined_call_operand.vmem [shape: f32[8,128], index: 2, kind: input, shape index: {}, may-alias: {2,7}]
  %s3 = inlined_call_operand.vmem [shape: f32[128,4], index: 3, kind: input, shape index: {}]
  %s4 = inlined_call_operand.vmem [shape: f32[128,128], index: 4, kind: input, shape index: {}]
  %s5 = inlined_call_operand.vmem [shape: f32[1,8,128], index: 5, kind: output, shape index: {0}]
  %s6 = inlined_call_operand.vmem [shape: f32[8,128], index: 6, kind: output, shape index: {1}, may-alias: {1,6}]
  %s7 = inlined_call_operand.vmem [shape: f32[8,128], index: 7, kind: output, shape index: {2}, may-alias: {2,7}]
  %8 = xla_tuple %s5, %s6, %s7
  %s9 = sld [smem:[#allocation0]]
  $region50: #{_simple_echo_sequence_impl.1} parent=0
    _
  %s11 = ssub.s32 1, %s9
  %s12 = scalar_select 0, %s11, %s9
  // Predicated region
  $region2: #{_simple_echo_sequence_impl.1} parent=0 // pred_check
    _
  $region3: #{_simple_echo_sequence_impl.1} parent=0 // pred_check_branch
    %14 = sbr.rel (0) target = $region5
  $region4: #{_simple_echo_sequence_impl.1} parent=0 // pred_region
    _
  $region5: #{_simple_echo_sequence_impl.1} parent=0 // pred_fallthru
    _
  // Predicated region
  $region6: #{_simple_echo_sequence_impl.1} parent=0 // pred_check
    _
  $region7: #{_simple_echo_sequence_impl.1} parent=0 // pred_check_branch
    %16 = sbr.rel (0) target = $region9
  $region8: #{_simple_echo_sequence_impl.1} parent=0 // pred_region
    _
  $region9: #{_simple_echo_sequence_impl.1} parent=0 // pred_fallthru
    _
  // Predicated region
  $region10: #{_simple_echo_sequence_impl.1} parent=0 // pred_check
    _
  $region11: #{_simple_echo_sequence_impl.1} parent=0 // pred_check_branch
    %18 = sbr.rel (0) target = $region13
  $region12: #{_simple_echo_sequence_impl.1} parent=0 // pred_region
    _
  $region13: #{_simple_echo_sequence_impl.1} parent=0 // pred_fallthru
    _
  // Predicated region
  $region14: #{_simple_echo_sequence_impl.1} parent=0 // pred_check
    _
  $region15: #{_simple_echo_sequence_impl.1} parent=0 // pred_check_branch
    %20 = sbr.rel (0) target = $region17
  $region16: #{_simple_echo_sequence_impl.1} parent=0 // pred_region
    _
  $region17: #{_simple_echo_sequence_impl.1} parent=0 // pred_fallthru
    _
  // Predicated region
  $region18: #{_simple_echo_sequence_impl.1} parent=0 // pred_check
    _
  $region19: #{_simple_echo_sequence_impl.1} parent=0 // pred_check_branch
    %22 = sbr.rel (0) target = $region21
  $region20: #{_simple_echo_sequence_impl.1} parent=0 // pred_region
    _
  $region21: #{_simple_echo_sequence_impl.1} parent=0 // pred_fallthru
    _
  %p23 = scmp.eq.s32.totalorder 0, 0
  // Predicated region
  $region22: #{_simple_echo_sequence_impl.1} parent=0 // pred_check
    %p24 = pneg %p23
  $region23: #{_simple_echo_sequence_impl.1} parent=0 // pred_check_branch
    %26 = sbr.rel (%p24) target = $region25
  $region24: #{_simple_echo_sequence_impl.1} parent=0 // pred_region
    %v27 = vld [vmem:[%s1] sm:$0xff]
    %28 = vst [vmem:[%s6] sm:$0xff] %v27
    %v29 = vld [vmem:[%s2] sm:$0xff]
    %30 = vst [vmem:[%s7] sm:$0xff] %v29
  $region25: #{_simple_echo_sequence_impl.1} parent=0 // pred_fallthru
    _
  %v31 = vld [vmem:[%s0] sm:$0xff]
  %v32 = vld [vmem:[%s6] sm:$0xff]
  %v33 = vld [vmem:[%s7] sm:$0xff]
  %v34 = vld [vmem:[%s3] sm:$0xff]
  %v35 = vld [vmem:[%s3 + $0x8] sm:$0xff]
  %v36 = vld [vmem:[%s3 + $0x10] sm:$0xff]
  %v37 = vld [vmem:[%s3 + $0x18] sm:$0xff]
  %v38 = vld [vmem:[%s3 + $0x20] sm:$0xff]
  %v39 = vld [vmem:[%s3 + $0x28] sm:$0xff]
  %v40 = vld [vmem:[%s3 + $0x30] sm:$0xff]
  %v41 = vld [vmem:[%s3 + $0x38] sm:$0xff]
  %v42 = vld [vmem:[%s3 + $0x40] sm:$0xff]
  %v43 = vld [vmem:[%s3 + $0x48] sm:$0xff]
  %v44 = vld [vmem:[%s3 + $0x50] sm:$0xff]
  %v45 = vld [vmem:[%s3 + $0x58] sm:$0xff]
  %v46 = vld [vmem:[%s3 + $0x60] sm:$0xff]
  %v47 = vld [vmem:[%s3 + $0x68] sm:$0xff]
  %v48 = vld [vmem:[%s3 + $0x70] sm:$0xff]
  %v49 = vld [vmem:[%s3 + $0x78] sm:$0xff]
  %vm50 = vcmask 31744
  %v52 = vsel %vm50, %v31, 0
  %v55 = vsel %vm50, %v34, 0
  %v58 = vsel %vm50, %v35, 0
  %v61 = vsel %vm50, %v36, 0
  %v64 = vsel %vm50, %v37, 0
  %v67 = vsel %vm50, %v38, 0
  %v70 = vsel %vm50, %v39, 0
  %v73 = vsel %vm50, %v40, 0
  %v76 = vsel %vm50, %v41, 0
  %v79 = vsel %vm50, %v42, 0
  %v82 = vsel %vm50, %v43, 0
  %v85 = vsel %vm50, %v44, 0
  %v88 = vsel %vm50, %v45, 0
  %v91 = vsel %vm50, %v46, 0
  %v94 = vsel %vm50, %v47, 0
  %v97 = vsel %vm50, %v48, 0
  %v100 = vsel %vm50, %v49, 0
  %102 = vmatprep.subr.mxu0 0.0
  %103 = vmatpush1.xpose.msra.mxu0 %v55
  %104 = vmatprep.subr.mxu0 0.0
  %105 = vmatpush1.xpose.msra.mxu0 %v58
  %106 = vmatprep.subr.mxu0 0.0
  %107 = vmatpush1.xpose.msra.mxu0 %v61
  %108 = vmatprep.subr.mxu0 0.0
  %109 = vmatpush1.xpose.msra.mxu0 %v64
  %110 = vmatprep.subr.mxu0 0.0
  %111 = vmatpush1.xpose.msra.mxu0 %v67
  %112 = vmatprep.subr.mxu0 0.0
  %113 = vmatpush1.xpose.msra.mxu0 %v70
  %114 = vmatprep.subr.mxu0 0.0
  %115 = vmatpush1.xpose.msra.mxu0 %v73
  %116 = vmatprep.subr.mxu0 0.0
  %117 = vmatpush1.xpose.msra.mxu0 %v76
  %118 = vmatprep.subr.mxu0 0.0
  %119 = vmatpush1.xpose.msra.mxu0 %v79
  %120 = vmatprep.subr.mxu0 0.0
  %121 = vmatpush1.xpose.msra.mxu0 %v82
  %122 = vmatprep.subr.mxu0 0.0
  %123 = vmatpush1.xpose.msra.mxu0 %v85
  %124 = vmatprep.subr.mxu0 0.0
  %125 = vmatpush1.xpose.msra.mxu0 %v88
  %126 = vmatprep.subr.mxu0 0.0
  %127 = vmatpush1.xpose.msra.mxu0 %v91
  %128 = vmatprep.subr.mxu0 0.0
  %129 = vmatpush1.xpose.msra.mxu0 %v94
  %130 = vmatprep.subr.mxu0 0.0
  %131 = vmatpush1.xpose.msra.mxu0 %v97
  %132 = vmatprep.subr.mxu0 0.0
  %133 = vmatpush1.xpose.msra.mxu0 %v100
  %134 = vmatprep.subr.mxu0 0.0
  %135 = vmatpush1.xpose.msra.mxu0 0.0
  %136 = vmatprep.subr.mxu0 0.0
  %137 = vmatpush1.xpose.msra.mxu0 0.0
  %138 = vmatprep.subr.mxu0 0.0
  %139 = vmatpush1.xpose.msra.mxu0 0.0
  %140 = vmatprep.subr.mxu0 0.0
  %141 = vmatpush1.xpose.msra.mxu0 0.0
  %142 = vmatprep.subr.mxu0 0.0
  %143 = vmatpush1.xpose.msra.mxu0 0.0
  %144 = vmatprep.subr.mxu0 0.0
  %145 = vmatpush1.xpose.msra.mxu0 0.0
  %146 = vmatprep.subr.mxu0 0.0
  %147 = vmatpush1.xpose.msra.mxu0 0.0
  %148 = vmatprep.subr.mxu0 0.0
  %149 = vmatpush1.xpose.msra.mxu0 0.0
  %150 = vmatprep.subr.mxu0 0.0
  %151 = vmatpush1.xpose.msra.mxu0 0.0
  %152 = vmatprep.subr.mxu0 0.0
  %153 = vmatpush1.xpose.msra.mxu0 0.0
  %154 = vmatprep.subr.mxu0 0.0
  %155 = vmatpush1.xpose.msra.mxu0 0.0
  %156 = vmatprep.subr.mxu0 0.0
  %157 = vmatpush1.xpose.msra.mxu0 0.0
  %158 = vmatprep.subr.mxu0 0.0
  %159 = vmatpush1.xpose.msra.mxu0 0.0
  %160 = vmatprep.subr.mxu0 0.0
  %161 = vmatpush1.xpose.msra.mxu0 0.0
  %162 = vmatprep.subr.mxu0 0.0
  %163 = vmatpush1.xpose.msra.mxu0 0.0
  %164 = vmatprep.subr.mxu0 0.0
  %165 = vmatpush1.xpose.msra.mxu0 0.0
  %166 = vmatprep.mubr.f32.mxu0 0.0
  %167 = vmatmul.mubr.f32.gmra.mrb[0].mxu0 %v52
  %v168 = vpop.f32.mrb[0].mxu0
  %v169 = vadd.f32 0.0, %v168
  %v170 = vpop.f32.mrb[0].mxu0
  %171 = vdwg.mxu0
  %v172 = vld [vmem:[%s4] sm:$0xff]
  %v173 = vld [vmem:[%s4 + $0x8] sm:$0xff]
  %v174 = vld [vmem:[%s4 + $0x10] sm:$0xff]
  %v175 = vld [vmem:[%s4 + $0x18] sm:$0xff]
  %v176 = vld [vmem:[%s4 + $0x20] sm:$0xff]
  %v177 = vld [vmem:[%s4 + $0x28] sm:$0xff]
  %v178 = vld [vmem:[%s4 + $0x30] sm:$0xff]
  %v179 = vld [vmem:[%s4 + $0x38] sm:$0xff]
  %v180 = vld [vmem:[%s4 + $0x40] sm:$0xff]
  %v181 = vld [vmem:[%s4 + $0x48] sm:$0xff]
  %v182 = vld [vmem:[%s4 + $0x50] sm:$0xff]
  %v183 = vld [vmem:[%s4 + $0x58] sm:$0xff]
  %v184 = vld [vmem:[%s4 + $0x60] sm:$0xff]
  %v185 = vld [vmem:[%s4 + $0x68] sm:$0xff]
  %v186 = vld [vmem:[%s4 + $0x70] sm:$0xff]
  %v187 = vld [vmem:[%s4 + $0x78] sm:$0xff]
  %188 = vmatprep.subr.mxu0 0.0
  %189 = vmatpush1.xpose.msra.mxu0 %v172
  %190 = vmatprep.subr.mxu0 0.0
  %191 = vmatpush1.xpose.msra.mxu0 %v173
  %192 = vmatprep.subr.mxu0 0.0
  %193 = vmatpush1.xpose.msra.mxu0 %v174
  %194 = vmatprep.subr.mxu0 0.0
  %195 = vmatpush1.xpose.msra.mxu0 %v175
  %196 = vmatprep.subr.mxu0 0.0
  %197 = vmatpush1.xpose.msra.mxu0 %v176
  %198 = vmatprep.subr.mxu0 0.0
  %199 = vmatpush1.xpose.msra.mxu0 %v177
  %200 = vmatprep.subr.mxu0 0.0
  %201 = vmatpush1.xpose.msra.mxu0 %v178
  %202 = vmatprep.subr.mxu0 0.0
  %203 = vmatpush1.xpose.msra.mxu0 %v179
  %204 = vmatprep.subr.mxu0 0.0
  %205 = vmatpush1.xpose.msra.mxu0 %v180
  %206 = vmatprep.subr.mxu0 0.0
  %207 = vmatpush1.xpose.msra.mxu0 %v181
  %208 = vmatprep.subr.mxu0 0.0
  %209 = vmatpush1.xpose.msra.mxu0 %v182
  %210 = vmatprep.subr.mxu0 0.0
  %211 = vmatpush1.xpose.msra.mxu0 %v183
  %212 = vmatprep.subr.mxu0 0.0
  %213 = vmatpush1.xpose.msra.mxu0 %v184
  %214 = vmatprep.subr.mxu0 0.0
  %215 = vmatpush1.xpose.msra.mxu0 %v185
  %216 = vmatprep.subr.mxu0 0.0
  %217 = vmatpush1.xpose.msra.mxu0 %v186
  %218 = vmatprep.subr.mxu0 0.0
  %219 = vmatpush1.xpose.msra.mxu0 %v187
  %220 = vmatprep.subr.mxu0 0.0
  %221 = vmatpush1.xpose.msra.mxu0 0.0
  %222 = vmatprep.subr.mxu0 0.0
  %223 = vmatpush1.xpose.msra.mxu0 0.0
  %224 = vmatprep.subr.mxu0 0.0
  %225 = vmatpush1.xpose.msra.mxu0 0.0
  %226 = vmatprep.subr.mxu0 0.0
  %227 = vmatpush1.xpose.msra.mxu0 0.0
  %228 = vmatprep.subr.mxu0 0.0
  %229 = vmatpush1.xpose.msra.mxu0 0.0
  %230 = vmatprep.subr.mxu0 0.0
  %231 = vmatpush1.xpose.msra.mxu0 0.0
  %232 = vmatprep.subr.mxu0 0.0
  %233 = vmatpush1.xpose.msra.mxu0 0.0
  %234 = vmatprep.subr.mxu0 0.0
  %235 = vmatpush1.xpose.msra.mxu0 0.0
  %236 = vmatprep.subr.mxu0 0.0
  %237 = vmatpush1.xpose.msra.mxu0 0.0
  %238 = vmatprep.subr.mxu0 0.0
  %239 = vmatpush1.xpose.msra.mxu0 0.0
  %240 = vmatprep.subr.mxu0 0.0
  %241 = vmatpush1.xpose.msra.mxu0 0.0
  %242 = vmatprep.subr.mxu0 0.0
  %243 = vmatpush1.xpose.msra.mxu0 0.0
  %244 = vmatprep.subr.mxu0 0.0
  %245 = vmatpush1.xpose.msra.mxu0 0.0
  %246 = vmatprep.subr.mxu0 0.0
  %247 = vmatpush1.xpose.msra.mxu0 0.0
  %248 = vmatprep.subr.mxu0 0.0
  %249 = vmatpush1.xpose.msra.mxu0 0.0
  %250 = vmatprep.subr.mxu0 0.0
  %251 = vmatpush1.xpose.msra.mxu0 0.0
  %252 = vmatprep.mubr.f32.mxu0 0.0
  %253 = vmatmul.mubr.f32.gmra.mrb[0].mxu0 %v33
  %v254 = vpop.f32.mrb[0].mxu0
  %v255 = vadd.f32 0.0, %v254
  %v256 = vpop.f32.mrb[0].mxu0
  %257 = vdwg.mxu0
  %v258 = vsub.f32 0.0, %v32
  %v259 = vadd.f32 %v258, %v169
  %v260 = vadd.f32 %v259, %v255
  %v261 = vmul.f32 %v260, 0.1
  %v262 = vadd.f32 %v32, %v261
  %v263 = vtanh.pop %v262
  %264 = vst [vmem:[%s6] sm:$0xff] %v262
  %265 = vst [vmem:[%s7] sm:$0xff] %v263
  %266 = vst [vmem:[%s5] sm:$0xff] %v263
  // Predicated region
  $region26: #{_simple_echo_sequence_impl.1} parent=0 // pred_check
    _
  $region27: #{_simple_echo_sequence_impl.1} parent=0 // pred_check_branch
    %268 = sbr.rel (0) target = $region29
  $region28: #{_simple_echo_sequence_impl.1} parent=0 // pred_region
    _
  $region29: #{_simple_echo_sequence_impl.1} parent=0 // pred_fallthru
    _
  // Predicated region
  $region30: #{_simple_echo_sequence_impl.1} parent=0 // pred_check
    _
  $region31: #{_simple_echo_sequence_impl.1} parent=0 // pred_check_branch
    %270 = sbr.rel (0) target = $region33
  $region32: #{_simple_echo_sequence_impl.1} parent=0 // pred_region
    _
  $region33: #{_simple_echo_sequence_impl.1} parent=0 // pred_fallthru
    _
  // Predicated region
  $region34: #{_simple_echo_sequence_impl.1} parent=0 // pred_check
    _
  $region35: #{_simple_echo_sequence_impl.1} parent=0 // pred_check_branch
    %272 = sbr.rel (0) target = $region37
  $region36: #{_simple_echo_sequence_impl.1} parent=0 // pred_region
    _
  $region37: #{_simple_echo_sequence_impl.1} parent=0 // pred_fallthru
    _
  // Predicated region
  $region38: #{_simple_echo_sequence_impl.1} parent=0 // pred_check
    _
  $region39: #{_simple_echo_sequence_impl.1} parent=0 // pred_check_branch
    %274 = sbr.rel (0) target = $region41
  $region40: #{_simple_echo_sequence_impl.1} parent=0 // pred_region
    _
  $region41: #{_simple_echo_sequence_impl.1} parent=0 // pred_fallthru
    _
  // Predicated region
  $region42: #{_simple_echo_sequence_impl.1} parent=0 // pred_check
    _
  $region43: #{_simple_echo_sequence_impl.1} parent=0 // pred_check_branch
    %276 = sbr.rel (0) target = $region45
  $region44: #{_simple_echo_sequence_impl.1} parent=0 // pred_region
    _
  $region45: #{_simple_echo_sequence_impl.1} parent=0 // pred_fallthru
    _
  // Predicated region
  $region46: #{_simple_echo_sequence_impl.1} parent=0 // pred_check
    _
  $region47: #{_simple_echo_sequence_impl.1} parent=0 // pred_check_branch
    %278 = sbr.rel (0) target = $region49
  $region48: #{_simple_echo_sequence_impl.1} parent=0 // pred_region
    _
  $region49: #{_simple_echo_sequence_impl.1} parent=0 // pred_fallthru
    _

</llo_original>
